<compile_context>
chip_gen: v5e
topology: v5e:2x2
jax: 0.10.0
libtpu: 0.0.40
codegen_flags: <defaults>
</compile_context>

<pallas_src>
import math

import jax
import jax.numpy as jnp
import numpy as np
from jax.experimental import pallas as pl
from jax.experimental.pallas import tpu as pltpu


def _dropout_scale_kernel(x_ref, m_ref, o_ref):
    """x_ref: (1, TL, CC); m_ref: (1, 1, CC) broadcast over rows; o_ref: (1, TL, CC)."""
    o_ref[...] = x_ref[...] * m_ref[...]


# ---------------------------------------------------------------------------
# Tiling heuristics
# ---------------------------------------------------------------------------

def _tpu_generation():
    """Crude TPU generation detection from device_kind (robust across jax versions)."""
    try:
        kind = jax.devices()[0].device_kind.lower()
    except Exception:
        kind = ""
    if "7" in kind:
        return "v7x"
    if "v6" in kind:
        return "v6e"
    if "v5e" in kind or "v5 lite" in kind or "v5litepod" in kind:
        return "v5e"
    return "other"


# generation -> (target block bytes, scoped vmem limit bytes, tensorcores/chip)
_GEN_PARAMS = {
    "v7x":   (8 * 1024 * 1024, 48 * 1024 * 1024, 2),
    "v6e":   (4 * 1024 * 1024, 32 * 1024 * 1024, 1),
    "v5e":   (2 * 1024 * 1024, 16 * 1024 * 1024, 1),
    "other": (4 * 1024 * 1024, 32 * 1024 * 1024, 1),
}


def _gen_params():
    target, vmem_limit, cores = _GEN_PARAMS[_tpu_generation()]
    # If the runtime exposes physical VMEM capacity, keep the scoped limit
    # safely below it (matters on v7x's 64 MiB VMEM).
    try:
        phys = pltpu.get_tpu_info().vmem_capacity_bytes
        vmem_limit = min(vmem_limit, (phys * 3) // 4)
    except Exception:
        pass
    return target, vmem_limit, cores


def _sublane(dtype):
    """Sublane packing quantum for a dtype (8 for 32-bit, 16 for 16-bit, 32 for 8-bit)."""
    return {4: 8, 2: 16, 1: 32}.get(jnp.dtype(dtype).itemsize, 8)


def _choose_fold(L, C, max_lanes=16384):
    """Fold factor G (G divides L) so the folded last dim G*C is lane-dense.

    The minimal G giving (G*C) % 128 == 0 is 128 / gcd(C, 128); any valid G is
    a multiple of it, so if it does not divide L no 128-aligned fold exists.
    """
    if C % 128 == 0:
        return 1
    g_align = 128 // math.gcd(C, 128)
    if L % g_align == 0 and g_align * C <= max_lanes:
        return g_align
    # Fallback for tiny C: at least widen the lane dim (still masked stores,
    # but fewer, wider ones).
    best = 1
    for G in range(2, L + 1):
        if L % G:
            continue
        if G * C > 512:
            break
        best = G
    return best


def _choose_rows(Lf, CC, itemsize, sub, target_bytes, min_row_tiles=1):
    """Row tile TL: ~target_bytes per block, multiple of the sublane packing
    (or the full dim), preferring divisors of Lf so no step is ragged, and
    yielding at least `min_row_tiles` tiles when the dim allows it."""
    rows_cap = max(1, target_bytes // (CC * itemsize))
    if min_row_tiles > 1 and Lf >= min_row_tiles * sub:
        rows_cap = min(rows_cap, Lf // min_row_tiles)
    if rows_cap >= Lf:
        return Lf
    # Largest divisor of Lf that is a multiple of `sub` and <= rows_cap.
    best = None
    d = 1
    while d * d <= Lf:
        if Lf % d == 0:
            for cand in (d, Lf // d):
                if cand <= rows_cap and cand % sub == 0:
                    if best is None or cand > best:
                        best = cand
        d += 1
    if best is not None:
        return best
    # Fallback: multiple of the dtype quantum (>= 8); last tile may be ragged
    # (Pallas masks the out-of-bounds part of the final block write).
    q = sub if rows_cap >= sub else 8
    tl = max(q, (rows_cap // q) * q)
    return min(tl, Lf)


# ---------------------------------------------------------------------------
# Public wrapper
# ---------------------------------------------------------------------------

def transposed_dropout1d(x, key, p=0.5, training=True, donate_x=False):
    """JAX/Pallas equivalent of TransposedDropout1D(p).forward(x)."""
    assert x.ndim == 3, x.ndim
    assert 0.0 <= p <= 1.0, p
    if (not training) or p == 0.0:
        return x
    if p >= 1.0:
        return jnp.zeros_like(x)

    B, L, C = x.shape
    itemsize = jnp.dtype(x.dtype).itemsize
    scale = 1.0 / (1.0 - p)
    target_bytes, vmem_limit, n_cores = _gen_params()

    # Per-(batch, channel) mask: whole channels dropped (Dropout1d semantics).
    # Drawn once in the wrapper so the all-or-nothing channel property can
    # never be broken by per-tile RNG.
    keep = jax.random.bernoulli(key, 1.0 - p, (B, C))
    mask = jnp.where(keep,
                     jnp.asarray(scale, dtype=x.dtype),
                     jnp.asarray(0.0, dtype=x.dtype))            # (B, C)

    # Fold G sequence rows onto the lane axis (free, contiguous reshape) so
    # the stored last dim is a multiple of 128 whenever possible.
    G = _choose_fold(L, C)
    Lf, CC = L // G, G * C
    xf = x.reshape(B, Lf, CC)
    # Folded lane index g*C + c carries channel c -> tile the mask G times.
    mf = jnp.tile(mask, (1, G)).reshape(B, 1, CC)

    sub = _sublane(x.dtype)
    # On v7x make sure the grid has >= 2 cells even for B == 1 so both
    # TensorCores get work under "parallel" semantics.
    min_row_tiles = 2 if (n_cores >= 2 and B == 1) else 1
    TL = _choose_rows(Lf, CC, itemsize, sub, target_bytes, min_row_tiles)
    grid = (B, pl.cdiv(Lf, TL))

    # NOTE: keep B as the leading grid axis and the mask index_map constant in
    # the inner l axis -- Pallas elides the mask re-DMA across l steps.
    out = pl.pallas_call(
        _dropout_scale_kernel,
        out_shape=jax.ShapeDtypeStruct((B, Lf, CC), x.dtype),
        grid=grid,
        in_specs=[
            pl.BlockSpec((1, TL, CC), lambda b, l: (b, l, 0)),
            pl.BlockSpec((1, 1, CC), lambda b, l: (b, 0, 0)),
        ],
        out_specs=pl.BlockSpec((1, TL, CC), lambda b, l: (b, l, 0)),
        compiler_params=pltpu.CompilerParams(
            dimension_semantics=("parallel", "parallel"),
            vmem_limit_bytes=vmem_limit),
        cost_estimate=pl.CostEstimate(
            flops=B * L * C,
            transcendentals=0,
            bytes_accessed=2 * B * L * C * itemsize + B * CC * itemsize),
        input_output_aliases=({0: 0} if donate_x else {}),
    )(xf, mf)

    return out.reshape(B, L, C)


if __name__ == "__main__":
    # Small shapes consistent with the module: (batch=2, seq=16, hidden=32).
    B, L, C = 2, 16, 32
    p = 0.5
    key = jax.random.PRNGKey(0)
    kx, kd = jax.random.split(key)
    x = jax.random.normal(kx, (B, L, C), dtype=jnp.float32)

    out = jax.block_until_ready(transposed_dropout1d(x, kd, p=p, training=True))

    # Validate Dropout1d-over-transposed semantics: every (b, c) channel is
    # either entirely zeroed or entirely scaled by 1/(1-p), constant over L.
    x_np = np.asarray(x)
    out_np = np.asarray(out)
    scale = 1.0 / (1.0 - p)
    assert out_np.shape == (B, L, C)
    n_dropped = 0
    for b in range(B):
        for c in range(C):
            col_out, col_x = out_np[b, :, c], x_np[b, :, c]
            dropped = np.allclose(col_out, 0.0, atol=1e-6)
            kept = np.allclose(col_out, col_x * scale, rtol=1e-5, atol=1e-6)
            assert dropped or kept, f"channel (b={b}, c={c}) not all-or-nothing"
            n_dropped += int(dropped)
    assert 0 < n_dropped < B * C, "expected a mix of kept and dropped channels"

    # Eval-mode / p=0 passthrough.
    assert np.array_equal(
        np.asarray(transposed_dropout1d(x, kd, p=p, training=False)), x_np)

    print("KERNEL_OK")
</pallas_src>

<mosaic_0001>
module attributes {stable_mosaic.version = 11 : i64} {
  func.func @_dropout_scale_kernel(%arg0: i32, %arg1: i32, %arg2: memref<1x4x128xf32, #tpu.memory_space<vmem>>, %arg3: memref<1x1x128xf32, #tpu.memory_space<vmem>>, %arg4: memref<1x4x128xf32, #tpu.memory_space<vmem>>) attributes {dimension_semantics = [#tpu.dimension_semantics<parallel>, #tpu.dimension_semantics<parallel>], iteration_bounds = array<i64: 2, 1>, scalar_prefetch = 0 : i64, scratch_operands = 0 : i64, tpu.core_type = #tpu.core_type<tc>, window_params = [{transform_indices = @transform_0, window_bounds = array<i64: 1, 4, 128>}, {transform_indices = @transform_1, window_bounds = array<i64: 1, 1, 128>}, {transform_indices = @transform_2, window_bounds = array<i64: 1, 4, 128>}]} {
    %c0 = arith.constant 0 : index
    %c0_0 = arith.constant 0 : index
    %c0_1 = arith.constant 0 : index
    %0 = vector.load %arg2[%c0, %c0_0, %c0_1] : memref<1x4x128xf32, #tpu.memory_space<vmem>>, vector<1x4x128xf32>
    %c0_2 = arith.constant 0 : index
    %c0_3 = arith.constant 0 : index
    %c0_4 = arith.constant 0 : index
    %1 = vector.load %arg3[%c0_2, %c0_3, %c0_4] : memref<1x1x128xf32, #tpu.memory_space<vmem>>, vector<1x1x128xf32>
    %2 = vector.broadcast %1 : vector<1x1x128xf32> to vector<1x4x128xf32>
    %3 = arith.mulf %0, %2 : vector<1x4x128xf32>
    %c0_5 = arith.constant 0 : index
    %c0_6 = arith.constant 0 : index
    %c0_7 = arith.constant 0 : index
    %4 = vector.load %arg4[%c0_5, %c0_6, %c0_7] : memref<1x4x128xf32, #tpu.memory_space<vmem>>, vector<1x4x128xf32>
    tpu.vector_store %arg4[%c0_5, %c0_6, %c0_7], %3 {strides = array<i32>} : memref<1x4x128xf32, #tpu.memory_space<vmem>>, vector<1x4x128xf32>,
    return
  }
  func.func @transform_0(%arg0: i32, %arg1: i32) -> (i32, i32, i32) {
    %c0_i32 = arith.constant 0 : i32
    %c0_i32_0 = arith.constant 0 : i32
    return %arg0, %arg1, %c0_i32 : i32, i32, i32
  }
  func.func @transform_1(%arg0: i32, %arg1: i32) -> (i32, i32, i32) {
    %c0_i32 = arith.constant 0 : i32
    %c0_i32_0 = arith.constant 0 : i32
    %c0_i32_1 = arith.constant 0 : i32
    return %arg0, %c0_i32, %c0_i32_0 : i32, i32, i32
  }
  func.func @transform_2(%arg0: i32, %arg1: i32) -> (i32, i32, i32) {
    %c0_i32 = arith.constant 0 : i32
    %c0_i32_0 = arith.constant 0 : i32
    return %arg0, %arg1, %c0_i32 : i32, i32, i32
  }
}

</mosaic_0001>

<llo_original>
// kernel: tpu_custom_call.1
$region0: #{tpu_custom_call.1}
  #allocation0 [shape = 'u32[]', space=smem, size = 0x4, offset = 0x4, fixed_abs, tag = 'smem constant byte address 0x4 - core index']
  #allocation1 [shape = 'u32[72,128]{1,0:T(1,128)}', space=vmem, size = 0x9000, scoped, tag = 'internal scratch']
  %s0 = inlined_call_operand.hbm [shape: f32[2,4,128], index: 0, kind: input, shape index: {}]
  %s1 = inlined_call_operand.hbm [shape: f32[2,1,128], index: 1, kind: input, shape index: {}]
  %s2 = inlined_call_operand.hbm [shape: f32[2,4,128], index: 2, kind: output, shape index: {}]
  %s3 = sld [smem:[#allocation0]]
  $region49: #{tpu_custom_call.1} parent=0
    _
  %s5 = ssub.s32 1, %s3
  %s6 = scalar_select 0, %s5, %s3
  $region1: #{tpu_custom_call.1} parent=0
    #allocation2 [shape = 'u8[4096]{0}', space=vmem, size = 0x1000, scoped, tag = 'input window, operand 0']
    #allocation3 [shape = 's32[2]{0}', space=sflag, size = 0x8, scoped, tag = 'scoped memory for tpu_custom_call.1']
    #allocation4 [shape = 's32[2]{0}', space=sflag, size = 0x8, scoped, tag = 'scoped memory for tpu_custom_call.1']
    #allocation5 [shape = 'u8[1024]{0}', space=vmem, size = 0x400, scoped, tag = 'input window, operand 1']
    #allocation6 [shape = 's32[2]{0}', space=sflag, size = 0x8, scoped, tag = 'scoped memory for tpu_custom_call.1']
    #allocation7 [shape = 'u8[4096]{0}', space=vmem, size = 0x1000, scoped, tag = 'output window, operand 0']
    %7 = vsyncpa [#allocation3], 0
    %s8 = scalar_lea.sflag [#allocation3], 1
    %9 = vsyncpa %s8, 0
    %10 = vsyncpa [#allocation6], 0
    %s11 = scalar_lea.sflag [#allocation6], 1
    %12 = vsyncpa %s11, 0
    %13 = vsyncpa [#allocation4], 0
    %s14 = scalar_lea.sflag [#allocation4], 1
    %15 = vsyncpa %s14, 0
    loop: start=0, step=1, limit=4
    $region2: #{tpu_custom_call.1} parent=1 // loop_pre_header
      _
    $region3: #{tpu_custom_call.1} parent=1 // loop_header
      %s17 = sphi 0, %s21
      %p18 = scmp.ge.s32.totalorder %s17, 4
      %s24 = sphi 0, %s36
      %s25 = sphi 0, %s32
      %s26 = sphi 0, %s24
      %s27 = sphi 0, %s25
      %s28 = sphi 0, %s26
      %s29 = sphi 0, %s27
      %s41 = sphi 0, %s43
      %s44 = sphi 0, %s41
      %s45 = sphi 0, %s44
      %s61 = sphi 0, %s45
      %s67 = sphi 0, %s69
      %s70 = sphi 0, %s67
      %s71 = sphi 0, %s70
      %s87 = sphi 0, %s71
      %s95 = sphi 0, %s97
      %s98 = sphi 0, %s95
      %s99 = sphi 0, %s98
      %s115 = sphi 0, %s99
    $region4: #{tpu_custom_call.1} parent=1 // loop_header_branch
      %20 = sbr.rel (%p18) target = $region8
    $region5: #{tpu_custom_call.1} parent=1 // loop_body
      %s22 = ssub.s32 %s17, 1
      %s23 = ssub.s32 %s17, 2
      %s30 = sadd.s32 1, %s25
      %p31 = scmp.ge.s32.totalorder %s30, 1
      %s32 = scalar_select %p31, 0, %s30
      %s33 = sadd.s32 1, %s24
      %s34 = scalar_select %p31, %s33, %s24
      %p35 = scmp.ge.s32.totalorder %s34, 2
      %s36 = scalar_select %p35, 0, %s34
      %s37 = ssub.s32 %s24, %s36
      %s38 = ssub.s32 %s25, %s32
      %s39 = sor.u32 %s37, %s38
      %p40 = scmp.eq.s32.totalorder %s39, 0
      %s42 = sadd.s32 %s41, 1
      %s43 = scalar_select %p40, %s41, %s42
      %p46 = pneg %p40
      %p47 = scmp.eq.s32.totalorder %s17, 1
      %p48 = por %p46, %p47
      %p49 = scmp.ne.s32.totalorder %s41, %s44
      %p50 = scmp.eq.s32.totalorder %s17, 0
      %p51 = por %p49, %p50
      %p52 = scmp.ne.s32.totalorder %s41, %s44
      %p53 = scmp.eq.s32.totalorder %s22, 1
      %p54 = por %p52, %p53
      %p55 = scmp.ne.s32.totalorder %s44, %s45
      %p56 = scmp.eq.s32.totalorder %s22, 0
      %p57 = por %p55, %p56
      %p58 = scmp.ne.s32.totalorder %s44, %s45
      %p59 = scmp.eq.s32.totalorder %s23, 1
      %p60 = por %p58, %p59
      %p62 = scmp.ne.s32.totalorder %s45, %s61
      %p63 = scmp.eq.s32.totalorder %s23, 0
      %p64 = por %p62, %p63
      %s65 = ssub.s32 %s24, %s36
      %p66 = scmp.eq.s32.totalorder %s65, 0
      %s68 = sadd.s32 %s67, 1
      %s69 = scalar_select %p66, %s67, %s68
      %p72 = pneg %p66
      %p73 = scmp.eq.s32.totalorder %s17, 1
      %p74 = por %p72, %p73
      %p75 = scmp.ne.s32.totalorder %s67, %s70
      %p76 = scmp.eq.s32.totalorder %s17, 0
      %p77 = por %p75, %p76
      %p78 = scmp.ne.s32.totalorder %s67, %s70
      %p79 = scmp.eq.s32.totalorder %s22, 1
      %p80 = por %p78, %p79
      %p81 = scmp.ne.s32.totalorder %s70, %s71
      %p82 = scmp.eq.s32.totalorder %s22, 0
      %p83 = por %p81, %p82
      %p84 = scmp.ne.s32.totalorder %s70, %s71
      %p85 = scmp.eq.s32.totalorder %s23, 1
      %p86 = por %p84, %p85
      %p88 = scmp.ne.s32.totalorder %s71, %s87
      %p89 = scmp.eq.s32.totalorder %s23, 0
      %p90 = por %p88, %p89
      %s91 = ssub.s32 %s24, %s36
      %s92 = ssub.s32 %s25, %s32
      %s93 = sor.u32 %s91, %s92
      %p94 = scmp.eq.s32.totalorder %s93, 0
      %s96 = sadd.s32 %s95, 1
      %s97 = scalar_select %p94, %s95, %s96
      %p100 = pneg %p94
      %p101 = scmp.eq.s32.totalorder %s17, 1
      %p102 = por %p100, %p101
      %p103 = scmp.ne.s32.totalorder %s95, %s98
      %p104 = scmp.eq.s32.totalorder %s17, 0
      %p105 = por %p103, %p104
      %p106 = scmp.ne.s32.totalorder %s95, %s98
      %p107 = scmp.eq.s32.totalorder %s22, 1
      %p108 = por %p106, %p107
      %p109 = scmp.ne.s32.totalorder %s98, %s99
      %p110 = scmp.eq.s32.totalorder %s22, 0
      %p111 = por %p109, %p110
      %p112 = scmp.ne.s32.totalorder %s98, %s99
      %p113 = scmp.eq.s32.totalorder %s23, 1
      %p114 = por %p112, %p113
      %p116 = scmp.ne.s32.totalorder %s99, %s115
      %p117 = scmp.eq.s32.totalorder %s23, 0
      %p118 = por %p116, %p117
      %p119 = scmp.le.s32.totalorder 1, %s17
      %p120 = scmp.lt.s32.totalorder %s17, 3
      %p121 = pnand %p119, %p120
      %p122 = pneg %p121
      // Predicated region
      $region9: #{tpu_custom_call.1} parent=5 // pred_check
        _
      $region10: #{tpu_custom_call.1} parent=5 // pred_check_branch
        %124 = sbr.rel (%p121) target = $region12
      $region11: #{tpu_custom_call.1} parent=5 // pred_region
        %s125 = ssub.s32 %s17, 1
      $region12: #{tpu_custom_call.1} parent=5 // pred_fallthru
        _
      %p126 = scmp.lt.s32.totalorder %s17, 2
      // Predicated region
      $region13: #{tpu_custom_call.1} parent=5 // pred_check
        %p127 = pneg %p126
      $region14: #{tpu_custom_call.1} parent=5 // pred_check_branch
        %129 = sbr.rel (%p127) target = $region16
      $region15: #{tpu_custom_call.1} parent=5 // pred_region
        // Predicated region
        $region17: #{tpu_custom_call.1} parent=15 // pred_check
          %p130 = pneg %p51
        $region18: #{tpu_custom_call.1} parent=15 // pred_check_branch
          %132 = sbr.rel (%p130) target = $region20
        $region19: #{tpu_custom_call.1} parent=15 // pred_region
          %s133 = sand.u32 %s41, 1
          %s134 = scalar_lea.sflag [#allocation3], %s133
          %s135 = sand.u32 %s41, 1
          %s136 = smul.addr %s135, 4
          %s137 = scalar_lea.vmem [#allocation2], %s136
          %139 = vsyncadd %s134, 0
          %s140 = sadd.s32 %s25, %s24
          %s141 = smul.addr %s140, 4
          %s142 = scalar_lea.hbm %s0, %s141
          %s144 = sshll.u32 %s142, 4
          %s145 = int_to_ptr.hbm [resolvable:$true] %s144
          %s146 = sshll.u32 %s137, 4
          %s147 = int_to_ptr.vmem [resolvable:$true] %s146
          %149 = dma.hbm_to_vmem [thread:$0]  %s145, 64, %s147, %s134
        $region20: #{tpu_custom_call.1} parent=15 // pred_fallthru
          _
        // Predicated region
        $region21: #{tpu_custom_call.1} parent=15 // pred_check
          %p150 = pneg %p77
        $region22: #{tpu_custom_call.1} parent=15 // pred_check_branch
          %152 = sbr.rel (%p150) target = $region24
        $region23: #{tpu_custom_call.1} parent=15 // pred_region
          %s153 = sand.u32 %s67, 1
          %s154 = scalar_lea.sflag [#allocation6], %s153
          %s155 = sand.u32 %s67, 1
          %s156 = scalar_lea.vmem [#allocation5], %s155
          %158 = vsyncadd %s154, 0
          %s159 = scalar_lea.hbm %s1, %s24
          %s161 = sshll.u32 %s159, 4
          %s162 = int_to_ptr.hbm [resolvable:$true] %s161
          %s163 = sshll.u32 %s156, 4
          %s164 = int_to_ptr.vmem [resolvable:$true] %s163
          %166 = dma.hbm_to_vmem [thread:$0]  %s162, 16, %s164, %s154
        $region24: #{tpu_custom_call.1} parent=15 // pred_fallthru
          _
      $region16: #{tpu_custom_call.1} parent=5 // pred_fallthru
        _
      %p167 = scmp.le.s32.totalorder 1, %s17
      %p168 = scmp.lt.s32.totalorder %s17, 3
      %p169 = pnand %p167, %p168
      %p170 = pneg %p169
      // Predicated region
      $region25: #{tpu_custom_call.1} parent=5 // pred_check
        _
      $region26: #{tpu_custom_call.1} parent=5 // pred_check_branch
        %172 = sbr.rel (%p169) target = $region28
      $region27: #{tpu_custom_call.1} parent=5 // pred_region
        %s173 = ssub.s32 %s17, 1
        %s174 = sand.u32 %s44, 1
        %s175 = scalar_lea.sflag [#allocation3], %s174
        %s176 = sand.u32 %s44, 1
        %s177 = smul.addr %s176, 4
        %s178 = scalar_lea.vmem [#allocation2], %s177
        // Predicated region
        $region29: #{tpu_custom_call.1} parent=27 // pred_check
          %p179 = pneg %p57
        $region30: #{tpu_custom_call.1} parent=27 // pred_check_branch
          %181 = sbr.rel (%p179) target = $region32
        $region31: #{tpu_custom_call.1} parent=27 // pred_region
          %183 = dma.done %s175, 64
        $region32: #{tpu_custom_call.1} parent=27 // pred_fallthru
          _
        %s184 = sand.u32 %s70, 1
        %s185 = scalar_lea.sflag [#allocation6], %s184
        %s186 = sand.u32 %s70, 1
        %s187 = scalar_lea.vmem [#allocation5], %s186
        // Predicated region
        $region33: #{tpu_custom_call.1} parent=27 // pred_check
          %p188 = pneg %p83
        $region34: #{tpu_custom_call.1} parent=27 // pred_check_branch
          %190 = sbr.rel (%p188) target = $region36
        $region35: #{tpu_custom_call.1} parent=27 // pred_region
          %192 = dma.done %s185, 16
        $region36: #{tpu_custom_call.1} parent=27 // pred_fallthru
          _
        %s193 = sand.u32 %s44, 1
        %s194 = scalar_lea.sflag [#allocation3], %s193
        %s195 = sand.u32 %s44, 1
        %s196 = smul.addr %s195, 4
        %s197 = scalar_lea.vmem [#allocation2], %s196
        %p198 = pneg %p57
        %p199 = pneg %p54
        %s200 = sand.u32 %s70, 1
        %s201 = scalar_lea.sflag [#allocation6], %s200
        %s202 = sand.u32 %s70, 1
        %s203 = scalar_lea.vmem [#allocation5], %s202
        %p204 = pneg %p83
        %p205 = pneg %p80
        %p206 = pneg %p111
        %p207 = pneg %p108
        %s208 = sand.u32 %s98, 1
        %s209 = scalar_lea.sflag [#allocation4], %s208
        %s210 = sand.u32 %s98, 1
        %s211 = smul.addr %s210, 4
        %s212 = scalar_lea.vmem [#allocation7], %s211
        %v213 = vld [vmem:[%s178] sm:$0xf]
        %v214 = vld [vmem:[%s187] sm:$0x1]
        %v216 = vperm.slane %v214, 0
        %v218 = vmul.f32 %v213, %v216
        %219 = vst [vmem:[%s212] sm:$0xf] %v218
        %s220 = sand.u32 %s98, 1
        %s221 = scalar_lea.sflag [#allocation4], %s220
        %s222 = sand.u32 %s98, 1
        %s223 = smul.addr %s222, 4
        %s224 = scalar_lea.vmem [#allocation7], %s223
        // Predicated region
        $region37: #{tpu_custom_call.1} parent=27 // pred_check
          %p225 = pneg %p108
        $region38: #{tpu_custom_call.1} parent=27 // pred_check_branch
          %227 = sbr.rel (%p225) target = $region40
        $region39: #{tpu_custom_call.1} parent=27 // pred_region
          %229 = vsyncadd %s221, 0
          %s230 = sadd.s32 %s27, %s26
          %s231 = smul.addr %s230, 4
          %s232 = scalar_lea.hbm %s2, %s231
          %s234 = sshll.u32 %s224, 4
          %s235 = int_to_ptr.vmem [resolvable:$true] %s234
          %s236 = sshll.u32 %s232, 4
          %s237 = int_to_ptr.hbm [resolvable:$true] %s236
          %239 = dma.vmem_to_hbm [thread:$0]  %s235, 64, %s237, %s221
        $region40: #{tpu_custom_call.1} parent=27 // pred_fallthru
          _
      $region28: #{tpu_custom_call.1} parent=5 // pred_fallthru
        _
      %p240 = scmp.le.s32.totalorder 2, %s17
      // Predicated region
      $region41: #{tpu_custom_call.1} parent=5 // pred_check
        %p241 = pneg %p240
      $region42: #{tpu_custom_call.1} parent=5 // pred_check_branch
        %243 = sbr.rel (%p241) target = $region44
      $region43: #{tpu_custom_call.1} parent=5 // pred_region
        %s244 = ssub.s32 %s17, 2
        // Predicated region
        $region45: #{tpu_custom_call.1} parent=43 // pred_check
          %p245 = pneg %p114
        $region46: #{tpu_custom_call.1} parent=43 // pred_check_branch
          %247 = sbr.rel (%p245) target = $region48
        $region47: #{tpu_custom_call.1} parent=43 // pred_region
          %s248 = sand.u32 %s99, 1
          %s249 = scalar_lea.sflag [#allocation4], %s248
          %s250 = sand.u32 %s99, 1
          %s251 = smul.addr %s250, 4
          %s252 = scalar_lea.vmem [#allocation7], %s251
          %254 = dma.done %s249, 64
        $region48: #{tpu_custom_call.1} parent=43 // pred_fallthru
          _
      $region44: #{tpu_custom_call.1} parent=5 // pred_fallthru
        _
    $region6: #{tpu_custom_call.1} parent=1 // loop_footer
      %s21 = sadd.s32 1, %s17
    $region7: #{tpu_custom_call.1} parent=1 // loop_footer_branch
      %16 = sbr.rel target = $region3
    $region8: #{tpu_custom_call.1} parent=1 // loop_exit
      _
    %255 = vsyncpa [#allocation3], 1
    %s256 = scalar_lea.sflag [#allocation3], 1
    %257 = vsyncpa %s256, 1
    %258 = vsyncpa [#allocation6], 1
    %s259 = scalar_lea.sflag [#allocation6], 1
    %260 = vsyncpa %s259, 1
    %261 = vsyncpa [#allocation4], 1
    %s262 = scalar_lea.sflag [#allocation4], 1
    %263 = vsyncpa %s262, 1

</llo_original>
